<compile_context>
chip_gen: v7x
topology: tpu7x:2x2x1
jax: 0.10.0
libtpu: 0.0.40
codegen_flags: <defaults>
</compile_context>

<pallas_src>
import jax
import jax.numpy as jnp
from jax.experimental import pallas as pl
from jax.experimental.pallas import tpu as pltpu

_MiB = 1024 * 1024


def _round_up(x, m):
    return ((x + m - 1) // m) * m


def _cdiv(a, b):
    return -(-a // b)


def _sublane_multiple(itemsize):
    # 32-bit dtypes: 8 sublanes per vreg; bf16/f16: 16; int8/fp8: 32.
    return max(8, 32 // max(1, itemsize))


# ---------------------------------------------------------------------------
# Small-C dense-spatial path: x viewed as (B, C, S//128, 128); W/bias in SMEM.
# ---------------------------------------------------------------------------

def _dense_kernel_factory(C):
    def kernel(w_ref, b_ref, x_ref, o_ref):
        # w_ref: (C, C) f32 in SMEM, W[ci, co].
        # b_ref: (1, C) f32 in SMEM.
        # x_ref/o_ref: (Bb, C, Ts, 128) VMEM blocks; spatial on sublanes+lanes.
        xf = x_ref[...].astype(jnp.float32)
        for co in range(C):                        # static unroll (C is small)
            acc = xf[:, co, :, :] + b_ref[0, co]   # residual + bias
            for ci in range(C):
                acc = acc + w_ref[ci, co] * xf[:, ci, :, :]
            o_ref[:, co, :, :] = acc.astype(o_ref.dtype)
    return kernel


def _plan_dense(B, C, S128, itemsize, sub, tgt_block_bytes, max_block_bytes):
    row_bytes = C * 128 * itemsize                 # one sublane row, one batch
    ts = min(S128, max(1, tgt_block_bytes // row_bytes))
    if ts < S128:
        ts = min(S128, max(sub, (ts // sub) * sub))
    bb = 1
    if ts == S128:                                 # whole spatial fits: fold batches
        bb = max(1, min(B, tgt_block_bytes // max(1, row_bytes * S128)))
    ts_pad = _round_up(ts, sub)
    if bb * C * ts_pad * 128 * itemsize > max_block_bytes:
        bb = max(1, max_block_bytes // (C * ts_pad * 128 * itemsize))
    # v7x has 2 TensorCores: keep >= 2 parallel grid steps when possible.
    if _cdiv(B, bb) * _cdiv(S128, ts) < 2:
        if B >= 2:
            bb = max(1, B // 2)
        elif S128 > sub:
            ts = max(sub, _round_up(_cdiv(S128, 2), sub))
    return bb, ts


def _residual_add_dense(x_nchw, w, b, *, tgt_block_bytes=4 * _MiB,
                        max_block_bytes=8 * _MiB):
    B, C, H, W = x_nchw.shape
    S = H * W
    S128 = S // 128
    itemsize = x_nchw.dtype.itemsize
    sub = _sublane_multiple(itemsize)

    x4 = x_nchw.reshape(B, C, S128, 128)           # free reshape, no HBM pass
    w_sm = w.astype(jnp.float32)                   # (C_in, C_out), SMEM-resident
    b_sm = b.astype(jnp.float32).reshape(1, C)

    bb, ts = _plan_dense(B, C, S128, itemsize, sub, tgt_block_bytes,
                         max_block_bytes)
    n_bt = _cdiv(B, bb)
    n_st = _cdiv(S128, ts)

    block_bytes = bb * C * _round_up(ts, sub) * 128 * itemsize
    footprint = 4 * block_bytes                    # double-buffered in + out
    vmem_limit = int(min(48 * _MiB, max(32 * _MiB, footprint + 4 * _MiB)))

    out = pl.pallas_call(
        _dense_kernel_factory(C),
        out_shape=jax.ShapeDtypeStruct((B, C, S128, 128), x_nchw.dtype),
        grid_spec=pltpu.PrefetchScalarGridSpec(
            num_scalar_prefetch=0,
            grid=(n_bt, n_st),
            in_specs=[
                pl.BlockSpec(memory_space=pltpu.MemorySpace.SMEM),   # W
                pl.BlockSpec(memory_space=pltpu.MemorySpace.SMEM),   # bias
                pl.BlockSpec((bb, C, ts, 128), lambda bi, si: (bi, 0, si, 0)),
            ],
            out_specs=pl.BlockSpec((bb, C, ts, 128),
                                   lambda bi, si: (bi, 0, si, 0)),
        ),
        compiler_params=pltpu.CompilerParams(
            dimension_semantics=("parallel", "parallel"),
            vmem_limit_bytes=vmem_limit,
        ),
    )(w_sm, b_sm, x4)
    return out.reshape(B, C, H, W)


# ---------------------------------------------------------------------------
# General path: channels on sublanes, spatial on lanes.  VPU rank-1 updates
# for C < 128, native-dtype MXU matmul for C >= 128.
# ---------------------------------------------------------------------------

def _rowmajor_kernel_factory(C, use_mxu):
    def kernel(x_ref, w_ref, b_ref, o_ref):
        # x_ref/o_ref: (1, C, T) blocks; channels on sublanes, spatial on lanes.
        # w_ref: (C, C) = W^T (row = output channel), VMEM resident.
        # b_ref: (C, 1) f32 bias column.
        x = x_ref[0]                               # (C, T)
        bias = b_ref[...]                          # (C, 1) f32
        if use_mxu:
            # Native-dtype operands on the MXU, f32 accumulation.
            y = jnp.dot(w_ref[...], x, preferred_element_type=jnp.float32)
            y = y + bias + x.astype(jnp.float32)
        else:
            xf = x.astype(jnp.float32)
            wf = w_ref[...].astype(jnp.float32)
            y = xf + bias                          # residual + bias
            for k in range(C):                     # static unroll, rank-1 updates
                y = y + wf[:, k:k + 1] * xf[k:k + 1, :]
        o_ref[0] = y.astype(o_ref.dtype)
    return kernel


def _plan_rowmajor(B, C, S, itemsize, w_itemsize, tgt_block_bytes,
                   vmem_budget_bytes):
    c_pad = _round_up(C, _sublane_multiple(itemsize))
    # Constant-index_map operands are still double-buffered: count them.
    w_bytes = (2 * _round_up(C, _sublane_multiple(w_itemsize))
               * _round_up(C, 128) * w_itemsize)
    b_bytes = 2 * _round_up(C, 8) * 128 * 4
    # TODO(synk): for very large C (2*C^2*w_itemsize near the VMEM limit) the
    # weight itself should be tiled over output channels; not done here.
    data_budget = max(2 * _MiB, vmem_budget_bytes - w_bytes - b_bytes)
    per_block = min(tgt_block_bytes, data_budget // 4)
    row_bytes = c_pad * itemsize                   # bytes per lane column
    t = max(1, per_block // row_bytes)
    if t >= S:
        t = S
    else:
        t = max(128, (t // 128) * 128)             # lane-dense, unmasked stores
        if t > S:
            t = S
    n_tiles = _cdiv(S, t)
    # v7x: keep >= 2 parallel grid steps when the problem allows it.
    if B * n_tiles < 2 and S >= 256:
        t = max(128, _round_up(_cdiv(S, 2), 128))
        n_tiles = _cdiv(S, t)
    footprint = 4 * c_pad * _round_up(t, 128) * itemsize + w_bytes + b_bytes
    vmem_limit = int(min(48 * _MiB, max(32 * _MiB, footprint + 4 * _MiB)))
    return t, n_tiles, vmem_limit


def _residual_add_rowmajor(x_nchw, w, b, *, tgt_block_bytes=4 * _MiB,
                           vmem_budget_bytes=40 * _MiB):
    B, C, H, W = x_nchw.shape
    S = H * W
    itemsize = x_nchw.dtype.itemsize

    x_s = x_nchw.reshape(B, C, S)                  # free reshape
    use_mxu = C >= 128
    w_t = jnp.transpose(w)                         # (C_out, C_in), tiny
    w_t = w_t.astype(x_nchw.dtype if use_mxu else jnp.float32)
    b_col = b.astype(jnp.float32).reshape(C, 1)

    t, n_tiles, vmem_limit = _plan_rowmajor(
        B, C, S, itemsize, w_t.dtype.itemsize, tgt_block_bytes,
        vmem_budget_bytes)

    out = pl.pallas_call(
        _rowmajor_kernel_factory(C, use_mxu),
        out_shape=jax.ShapeDtypeStruct((B, C, S), x_s.dtype),
        grid_spec=pltpu.PrefetchScalarGridSpec(
            num_scalar_prefetch=0,
            grid=(B, n_tiles),
            in_specs=[
                pl.BlockSpec((1, C, t), lambda bi, si: (bi, 0, si)),
                pl.BlockSpec((C, C), lambda bi, si: (0, 0)),
                pl.BlockSpec((C, 1), lambda bi, si: (0, 0)),
            ],
            out_specs=pl.BlockSpec((1, C, t), lambda bi, si: (bi, 0, si)),
        ),
        compiler_params=pltpu.CompilerParams(
            dimension_semantics=("parallel", "parallel"),
            vmem_limit_bytes=vmem_limit,
        ),
    )(x_s, w_t, b_col)
    return out.reshape(B, C, H, W)


def residual_add(x_nchw, w, b):
    """fn(x) + x in NCHW layout, fn = per-channel linear (1x1 conv)."""
    B, C, H, W = x_nchw.shape
    S = H * W
    sub = _sublane_multiple(x_nchw.dtype.itemsize)
    if C < sub and C <= 16 and S % 128 == 0:
        return _residual_add_dense(x_nchw, w, b)
    return _residual_add_rowmajor(x_nchw, w, b)


if __name__ == "__main__":
    key = jax.random.PRNGKey(0)
    kx, kw, kb = jax.random.split(key, 3)

    # Primary shape (exercises the small-C dense-spatial path).
    B, C, H, W = 2, 4, 16, 16
    x = jax.random.normal(kx, (B, C, H, W), dtype=jnp.float32)
    w = jax.random.normal(kw, (C, C), dtype=jnp.float32) * 0.1
    b = jax.random.normal(kb, (C,), dtype=jnp.float32) * 0.1

    out = jax.block_until_ready(residual_add(x, w, b))

    x_rows = jnp.transpose(x, (0, 2, 3, 1)).reshape(-1, C)
    ref = (x_rows @ w + b + x_rows).reshape(B, H, W, C)
    ref = jnp.transpose(ref, (0, 3, 1, 2))
    assert jnp.allclose(out, ref, atol=1e-5, rtol=1e-5), "dense path mismatch"

    # Secondary shape (exercises the channels-on-sublanes path, C fills sublanes).
    C2 = 8
    kx2, kw2, kb2 = jax.random.split(kw, 3)
    x2 = jax.random.normal(kx2, (B, C2, H, W), dtype=jnp.float32)
    w2 = jax.random.normal(kw2, (C2, C2), dtype=jnp.float32) * 0.1
    b2 = jax.random.normal(kb2, (C2,), dtype=jnp.float32) * 0.1
    out2 = jax.block_until_ready(residual_add(x2, w2, b2))
    x2_rows = jnp.transpose(x2, (0, 2, 3, 1)).reshape(-1, C2)
    ref2 = (x2_rows @ w2 + b2 + x2_rows).reshape(B, H, W, C2)
    ref2 = jnp.transpose(ref2, (0, 3, 1, 2))
    assert jnp.allclose(out2, ref2, atol=1e-5, rtol=1e-5), "rowmajor path mismatch"

    print("KERNEL_OK")
</pallas_src>

<mosaic_0001>
module attributes {stable_mosaic.version = 11 : i64} {
  func.func @kernel(%arg0: i32, %arg1: i32, %arg2: memref<4x4xf32, #tpu.memory_space<smem>>, %arg3: memref<1x4xf32, #tpu.memory_space<smem>>, %arg4: memref<1x4x2x128xf32, #tpu.memory_space<vmem>>, %arg5: memref<1x4x2x128xf32, #tpu.memory_space<vmem>>) attributes {dimension_semantics = [#tpu.dimension_semantics<parallel>, #tpu.dimension_semantics<parallel>], iteration_bounds = array<i64: 2, 1>, scalar_prefetch = 0 : i64, scratch_operands = 0 : i64, tpu.core_type = #tpu.core_type<tc>, window_params = [{transform_indices = @transform_0, window_bounds = array<i64: 4, 4>}, {transform_indices = @transform_1, window_bounds = array<i64: 1, 4>}, {transform_indices = @transform_2, window_bounds = array<i64: 1, 4, 2, 128>}, {transform_indices = @transform_3, window_bounds = array<i64: 1, 4, 2, 128>}]} {
    %c0 = arith.constant 0 : index
    %c0_0 = arith.constant 0 : index
    %c0_1 = arith.constant 0 : index
    %c0_2 = arith.constant 0 : index
    %0 = vector.load %arg4[%c0, %c0_0, %c0_1, %c0_2] : memref<1x4x2x128xf32, #tpu.memory_space<vmem>>, vector<1x4x2x128xf32>
    %1 = vector.extract_strided_slice %0 {offsets = [0, 0, 0, 0], sizes = [1, 1, 2, 128], strides = [1, 1, 1, 1]} : vector<1x4x2x128xf32> to vector<1x1x2x128xf32>
    %2 = vector.shape_cast %1 : vector<1x1x2x128xf32> to vector<1x2x128xf32>
    %c0_3 = arith.constant 0 : index
    %c0_4 = arith.constant 0 : index
    %3 = memref.load %arg3[%c0_3, %c0_4] : memref<1x4xf32, #tpu.memory_space<smem>>
    %4 = vector.broadcast %3 : f32 to vector<1x2x128xf32>
    %5 = arith.addf %2, %4 : vector<1x2x128xf32>
    %c0_5 = arith.constant 0 : index
    %c0_6 = arith.constant 0 : index
    %6 = memref.load %arg2[%c0_5, %c0_6] : memref<4x4xf32, #tpu.memory_space<smem>>
    %7 = vector.extract_strided_slice %0 {offsets = [0, 0, 0, 0], sizes = [1, 1, 2, 128], strides = [1, 1, 1, 1]} : vector<1x4x2x128xf32> to vector<1x1x2x128xf32>
    %8 = vector.shape_cast %7 : vector<1x1x2x128xf32> to vector<1x2x128xf32>
    %9 = vector.broadcast %6 : f32 to vector<1x2x128xf32>
    %10 = arith.mulf %9, %8 : vector<1x2x128xf32>
    %11 = arith.addf %5, %10 : vector<1x2x128xf32>
    %c1 = arith.constant 1 : index
    %c0_7 = arith.constant 0 : index
    %12 = memref.load %arg2[%c1, %c0_7] : memref<4x4xf32, #tpu.memory_space<smem>>
    %13 = vector.extract_strided_slice %0 {offsets = [0, 1, 0, 0], sizes = [1, 1, 2, 128], strides = [1, 1, 1, 1]} : vector<1x4x2x128xf32> to vector<1x1x2x128xf32>
    %14 = vector.shape_cast %13 : vector<1x1x2x128xf32> to vector<1x2x128xf32>
    %15 = vector.broadcast %12 : f32 to vector<1x2x128xf32>
    %16 = arith.mulf %15, %14 : vector<1x2x128xf32>
    %17 = arith.addf %11, %16 : vector<1x2x128xf32>
    %c2 = arith.constant 2 : index
    %c0_8 = arith.constant 0 : index
    %18 = memref.load %arg2[%c2, %c0_8] : memref<4x4xf32, #tpu.memory_space<smem>>
    %19 = vector.extract_strided_slice %0 {offsets = [0, 2, 0, 0], sizes = [1, 1, 2, 128], strides = [1, 1, 1, 1]} : vector<1x4x2x128xf32> to vector<1x1x2x128xf32>
    %20 = vector.shape_cast %19 : vector<1x1x2x128xf32> to vector<1x2x128xf32>
    %21 = vector.broadcast %18 : f32 to vector<1x2x128xf32>
    %22 = arith.mulf %21, %20 : vector<1x2x128xf32>
    %23 = arith.addf %17, %22 : vector<1x2x128xf32>
    %c3 = arith.constant 3 : index
    %c0_9 = arith.constant 0 : index
    %24 = memref.load %arg2[%c3, %c0_9] : memref<4x4xf32, #tpu.memory_space<smem>>
    %25 = vector.extract_strided_slice %0 {offsets = [0, 3, 0, 0], sizes = [1, 1, 2, 128], strides = [1, 1, 1, 1]} : vector<1x4x2x128xf32> to vector<1x1x2x128xf32>
    %26 = vector.shape_cast %25 : vector<1x1x2x128xf32> to vector<1x2x128xf32>
    %27 = vector.broadcast %24 : f32 to vector<1x2x128xf32>
    %28 = arith.mulf %27, %26 : vector<1x2x128xf32>
    %29 = arith.addf %23, %28 : vector<1x2x128xf32>
    %c0_10 = arith.constant 0 : index
    %c0_11 = arith.constant 0 : index
    %c0_12 = arith.constant 0 : index
    %c0_13 = arith.constant 0 : index
    %30 = vector.load %arg5[%c0_10, %c0_11, %c0_12, %c0_13] : memref<1x4x2x128xf32, #tpu.memory_space<vmem>>, vector<1x1x2x128xf32>
    %31 = vector.shape_cast %30 : vector<1x1x2x128xf32> to vector<1x2x128xf32>
    %32 = vector.shape_cast %29 : vector<1x2x128xf32> to vector<1x1x2x128xf32>
    tpu.vector_store %arg5[%c0_10, %c0_11, %c0_12, %c0_13], %32 {strides = array<i32>} : memref<1x4x2x128xf32, #tpu.memory_space<vmem>>, vector<1x1x2x128xf32>,
    %33 = vector.extract_strided_slice %0 {offsets = [0, 1, 0, 0], sizes = [1, 1, 2, 128], strides = [1, 1, 1, 1]} : vector<1x4x2x128xf32> to vector<1x1x2x128xf32>
    %34 = vector.shape_cast %33 : vector<1x1x2x128xf32> to vector<1x2x128xf32>
    %c0_14 = arith.constant 0 : index
    %c1_15 = arith.constant 1 : index
    %35 = memref.load %arg3[%c0_14, %c1_15] : memref<1x4xf32, #tpu.memory_space<smem>>
    %36 = vector.broadcast %35 : f32 to vector<1x2x128xf32>
    %37 = arith.addf %34, %36 : vector<1x2x128xf32>
    %c0_16 = arith.constant 0 : index
    %c1_17 = arith.constant 1 : index
    %38 = memref.load %arg2[%c0_16, %c1_17] : memref<4x4xf32, #tpu.memory_space<smem>>
    %39 = vector.extract_strided_slice %0 {offsets = [0, 0, 0, 0], sizes = [1, 1, 2, 128], strides = [1, 1, 1, 1]} : vector<1x4x2x128xf32> to vector<1x1x2x128xf32>
    %40 = vector.shape_cast %39 : vector<1x1x2x128xf32> to vector<1x2x128xf32>
    %41 = vector.broadcast %38 : f32 to vector<1x2x128xf32>
    %42 = arith.mulf %41, %40 : vector<1x2x128xf32>
    %43 = arith.addf %37, %42 : vector<1x2x128xf32>
    %c1_18 = arith.constant 1 : index
    %c1_19 = arith.constant 1 : index
    %44 = memref.load %arg2[%c1_18, %c1_19] : memref<4x4xf32, #tpu.memory_space<smem>>
    %45 = vector.extract_strided_slice %0 {offsets = [0, 1, 0, 0], sizes = [1, 1, 2, 128], strides = [1, 1, 1, 1]} : vector<1x4x2x128xf32> to vector<1x1x2x128xf32>
    %46 = vector.shape_cast %45 : vector<1x1x2x128xf32> to vector<1x2x128xf32>
    %47 = vector.broadcast %44 : f32 to vector<1x2x128xf32>
    %48 = arith.mulf %47, %46 : vector<1x2x128xf32>
    %49 = arith.addf %43, %48 : vector<1x2x128xf32>
    %c2_20 = arith.constant 2 : index
    %c1_21 = arith.constant 1 : index
    %50 = memref.load %arg2[%c2_20, %c1_21] : memref<4x4xf32, #tpu.memory_space<smem>>
    %51 = vector.extract_strided_slice %0 {offsets = [0, 2, 0, 0], sizes = [1, 1, 2, 128], strides = [1, 1, 1, 1]} : vector<1x4x2x128xf32> to vector<1x1x2x128xf32>
    %52 = vector.shape_cast %51 : vector<1x1x2x128xf32> to vector<1x2x128xf32>
    %53 = vector.broadcast %50 : f32 to vector<1x2x128xf32>
    %54 = arith.mulf %53, %52 : vector<1x2x128xf32>
    %55 = arith.addf %49, %54 : vector<1x2x128xf32>
    %c3_22 = arith.constant 3 : index
    %c1_23 = arith.constant 1 : index
    %56 = memref.load %arg2[%c3_22, %c1_23] : memref<4x4xf32, #tpu.memory_space<smem>>
    %57 = vector.extract_strided_slice %0 {offsets = [0, 3, 0, 0], sizes = [1, 1, 2, 128], strides = [1, 1, 1, 1]} : vector<1x4x2x128xf32> to vector<1x1x2x128xf32>
    %58 = vector.shape_cast %57 : vector<1x1x2x128xf32> to vector<1x2x128xf32>
    %59 = vector.broadcast %56 : f32 to vector<1x2x128xf32>
    %60 = arith.mulf %59, %58 : vector<1x2x128xf32>
    %61 = arith.addf %55, %60 : vector<1x2x128xf32>
    %c0_24 = arith.constant 0 : index
    %c1_25 = arith.constant 1 : index
    %c0_26 = arith.constant 0 : index
    %c0_27 = arith.constant 0 : index
    %62 = vector.load %arg5[%c0_24, %c1_25, %c0_26, %c0_27] : memref<1x4x2x128xf32, #tpu.memory_space<vmem>>, vector<1x1x2x128xf32>
    %63 = vector.shape_cast %62 : vector<1x1x2x128xf32> to vector<1x2x128xf32>
    %64 = vector.shape_cast %61 : vector<1x2x128xf32> to vector<1x1x2x128xf32>
    tpu.vector_store %arg5[%c0_24, %c1_25, %c0_26, %c0_27], %64 {strides = array<i32>} : memref<1x4x2x128xf32, #tpu.memory_space<vmem>>, vector<1x1x2x128xf32>,
    %65 = vector.extract_strided_slice %0 {offsets = [0, 2, 0, 0], sizes = [1, 1, 2, 128], strides = [1, 1, 1, 1]} : vector<1x4x2x128xf32> to vector<1x1x2x128xf32>
    %66 = vector.shape_cast %65 : vector<1x1x2x128xf32> to vector<1x2x128xf32>
    %c0_28 = arith.constant 0 : index
    %c2_29 = arith.constant 2 : index
    %67 = memref.load %arg3[%c0_28, %c2_29] : memref<1x4xf32, #tpu.memory_space<smem>>
    %68 = vector.broadcast %67 : f32 to vector<1x2x128xf32>
    %69 = arith.addf %66, %68 : vector<1x2x128xf32>
    %c0_30 = arith.constant 0 : index
    %c2_31 = arith.constant 2 : index
    %70 = memref.load %arg2[%c0_30, %c2_31] : memref<4x4xf32, #tpu.memory_space<smem>>
    %71 = vector.extract_strided_slice %0 {offsets = [0, 0, 0, 0], sizes = [1, 1, 2, 128], strides = [1, 1, 1, 1]} : vector<1x4x2x128xf32> to vector<1x1x2x128xf32>
    %72 = vector.shape_cast %71 : vector<1x1x2x128xf32> to vector<1x2x128xf32>
    %73 = vector.broadcast %70 : f32 to vector<1x2x128xf32>
    %74 = arith.mulf %73, %72 : vector<1x2x128xf32>
    %75 = arith.addf %69, %74 : vector<1x2x128xf32>
    %c1_32 = arith.constant 1 : index
    %c2_33 = arith.constant 2 : index
    %76 = memref.load %arg2[%c1_32, %c2_33] : memref<4x4xf32, #tpu.memory_space<smem>>
    %77 = vector.extract_strided_slice %0 {offsets = [0, 1, 0, 0], sizes = [1, 1, 2, 128], strides = [1, 1, 1, 1]} : vector<1x4x2x128xf32> to vector<1x1x2x128xf32>
    %78 = vector.shape_cast %77 : vector<1x1x2x128xf32> to vector<1x2x128xf32>
    %79 = vector.broadcast %76 : f32 to vector<1x2x128xf32>
    %80 = arith.mulf %79, %78 : vector<1x2x128xf32>
    %81 = arith.addf %75, %80 : vector<1x2x128xf32>
    %c2_34 = arith.constant 2 : index
    %c2_35 = arith.constant 2 : index
    %82 = memref.load %arg2[%c2_34, %c2_35] : memref<4x4xf32, #tpu.memory_space<smem>>
    %83 = vector.extract_strided_slice %0 {offsets = [0, 2, 0, 0], sizes = [1, 1, 2, 128], strides = [1, 1, 1, 1]} : vector<1x4x2x128xf32> to vector<1x1x2x128xf32>
    %84 = vector.shape_cast %83 : vector<1x1x2x128xf32> to vector<1x2x128xf32>
    %85 = vector.broadcast %82 : f32 to vector<1x2x128xf32>
    %86 = arith.mulf %85, %84 : vector<1x2x128xf32>
    %87 = arith.addf %81, %86 : vector<1x2x128xf32>
    %c3_36 = arith.constant 3 : index
    %c2_37 = arith.constant 2 : index
    %88 = memref.load %arg2[%c3_36, %c2_37] : memref<4x4xf32, #tpu.memory_space<smem>>
    %89 = vector.extract_strided_slice %0 {offsets = [0, 3, 0, 0], sizes = [1, 1, 2, 128], strides = [1, 1, 1, 1]} : vector<1x4x2x128xf32> to vector<1x1x2x128xf32>
    %90 = vector.shape_cast %89 : vector<1x1x2x128xf32> to vector<1x2x128xf32>
    %91 = vector.broadcast %88 : f32 to vector<1x2x128xf32>
    %92 = arith.mulf %91, %90 : vector<1x2x128xf32>
    %93 = arith.addf %87, %92 : vector<1x2x128xf32>
    %c0_38 = arith.constant 0 : index
    %c2_39 = arith.constant 2 : index
    %c0_40 = arith.constant 0 : index
    %c0_41 = arith.constant 0 : index
    %94 = vector.load %arg5[%c0_38, %c2_39, %c0_40, %c0_41] : memref<1x4x2x128xf32, #tpu.memory_space<vmem>>, vector<1x1x2x128xf32>
    %95 = vector.shape_cast %94 : vector<1x1x2x128xf32> to vector<1x2x128xf32>
    %96 = vector.shape_cast %93 : vector<1x2x128xf32> to vector<1x1x2x128xf32>
    tpu.vector_store %arg5[%c0_38, %c2_39, %c0_40, %c0_41], %96 {strides = array<i32>} : memref<1x4x2x128xf32, #tpu.memory_space<vmem>>, vector<1x1x2x128xf32>,
    %97 = vector.extract_strided_slice %0 {offsets = [0, 3, 0, 0], sizes = [1, 1, 2, 128], strides = [1, 1, 1, 1]} : vector<1x4x2x128xf32> to vector<1x1x2x128xf32>
    %98 = vector.shape_cast %97 : vector<1x1x2x128xf32> to vector<1x2x128xf32>
    %c0_42 = arith.constant 0 : index
    %c3_43 = arith.constant 3 : index
    %99 = memref.load %arg3[%c0_42, %c3_43] : memref<1x4xf32, #tpu.memory_space<smem>>
    %100 = vector.broadcast %99 : f32 to vector<1x2x128xf32>
    %101 = arith.addf %98, %100 : vector<1x2x128xf32>
    %c0_44 = arith.constant 0 : index
    %c3_45 = arith.constant 3 : index
    %102 = memref.load %arg2[%c0_44, %c3_45] : memref<4x4xf32, #tpu.memory_space<smem>>
    %103 = vector.extract_strided_slice %0 {offsets = [0, 0, 0, 0], sizes = [1, 1, 2, 128], strides = [1, 1, 1, 1]} : vector<1x4x2x128xf32> to vector<1x1x2x128xf32>
    %104 = vector.shape_cast %103 : vector<1x1x2x128xf32> to vector<1x2x128xf32>
    %105 = vector.broadcast %102 : f32 to vector<1x2x128xf32>
    %106 = arith.mulf %105, %104 : vector<1x2x128xf32>
    %107 = arith.addf %101, %106 : vector<1x2x128xf32>
    %c1_46 = arith.constant 1 : index
    %c3_47 = arith.constant 3 : index
    %108 = memref.load %arg2[%c1_46, %c3_47] : memref<4x4xf32, #tpu.memory_space<smem>>
    %109 = vector.extract_strided_slice %0 {offsets = [0, 1, 0, 0], sizes = [1, 1, 2, 128], strides = [1, 1, 1, 1]} : vector<1x4x2x128xf32> to vector<1x1x2x128xf32>
    %110 = vector.shape_cast %109 : vector<1x1x2x128xf32> to vector<1x2x128xf32>
    %111 = vector.broadcast %108 : f32 to vector<1x2x128xf32>
    %112 = arith.mulf %111, %110 : vector<1x2x128xf32>
    %113 = arith.addf %107, %112 : vector<1x2x128xf32>
    %c2_48 = arith.constant 2 : index
    %c3_49 = arith.constant 3 : index
    %114 = memref.load %arg2[%c2_48, %c3_49] : memref<4x4xf32, #tpu.memory_space<smem>>
    %115 = vector.extract_strided_slice %0 {offsets = [0, 2, 0, 0], sizes = [1, 1, 2, 128], strides = [1, 1, 1, 1]} : vector<1x4x2x128xf32> to vector<1x1x2x128xf32>
    %116 = vector.shape_cast %115 : vector<1x1x2x128xf32> to vector<1x2x128xf32>
    %117 = vector.broadcast %114 : f32 to vector<1x2x128xf32>
    %118 = arith.mulf %117, %116 : vector<1x2x128xf32>
    %119 = arith.addf %113, %118 : vector<1x2x128xf32>
    %c3_50 = arith.constant 3 : index
    %c3_51 = arith.constant 3 : index
    %120 = memref.load %arg2[%c3_50, %c3_51] : memref<4x4xf32, #tpu.memory_space<smem>>
    %121 = vector.extract_strided_slice %0 {offsets = [0, 3, 0, 0], sizes = [1, 1, 2, 128], strides = [1, 1, 1, 1]} : vector<1x4x2x128xf32> to vector<1x1x2x128xf32>
    %122 = vector.shape_cast %121 : vector<1x1x2x128xf32> to vector<1x2x128xf32>
    %123 = vector.broadcast %120 : f32 to vector<1x2x128xf32>
    %124 = arith.mulf %123, %122 : vector<1x2x128xf32>
    %125 = arith.addf %119, %124 : vector<1x2x128xf32>
    %c0_52 = arith.constant 0 : index
    %c3_53 = arith.constant 3 : index
    %c0_54 = arith.constant 0 : index
    %c0_55 = arith.constant 0 : index
    %126 = vector.load %arg5[%c0_52, %c3_53, %c0_54, %c0_55] : memref<1x4x2x128xf32, #tpu.memory_space<vmem>>, vector<1x1x2x128xf32>
    %127 = vector.shape_cast %126 : vector<1x1x2x128xf32> to vector<1x2x128xf32>
    %128 = vector.shape_cast %125 : vector<1x2x128xf32> to vector<1x1x2x128xf32>
    tpu.vector_store %arg5[%c0_52, %c3_53, %c0_54, %c0_55], %128 {strides = array<i32>} : memref<1x4x2x128xf32, #tpu.memory_space<vmem>>, vector<1x1x2x128xf32>,
    return
  }
  func.func @transform_0(%arg0: i32, %arg1: i32) -> (i32, i32) {
    %c0_i32 = arith.constant 0 : i32
    %c0_i32_0 = arith.constant 0 : i32
    %c0_i32_1 = arith.constant 0 : i32
    return %c0_i32, %c0_i32_0 : i32, i32
  }
  func.func @transform_1(%arg0: i32, %arg1: i32) -> (i32, i32) {
    %c0_i32 = arith.constant 0 : i32
    %c0_i32_0 = arith.constant 0 : i32
    %c0_i32_1 = arith.constant 0 : i32
    return %c0_i32, %c0_i32_0 : i32, i32
  }
  func.func @transform_2(%arg0: i32, %arg1: i32) -> (i32, i32, i32, i32) {
    %c0_i32 = arith.constant 0 : i32
    %c0_i32_0 = arith.constant 0 : i32
    %c0_i32_1 = arith.constant 0 : i32
    return %arg0, %c0_i32, %arg1, %c0_i32_0 : i32, i32, i32, i32
  }
  func.func @transform_3(%arg0: i32, %arg1: i32) -> (i32, i32, i32, i32) {
    %c0_i32 = arith.constant 0 : i32
    %c0_i32_0 = arith.constant 0 : i32
    %c0_i32_1 = arith.constant 0 : i32
    return %arg0, %c0_i32, %arg1, %c0_i32_0 : i32, i32, i32, i32
  }
}

</mosaic_0001>

<llo_original>
// kernel: tpu_custom_call.1
$region0: #{tpu_custom_call.1}
  #allocation0 [shape = 'u32[]', space=smem, size = 0x4, offset = 0x4, fixed_abs, tag = 'smem constant byte address 0x4 - core index']
  #allocation1 [shape = 'u32[144,128]{1,0:T(1,128)}', space=vmem, size = 0x12000, scoped, tag = 'internal scratch']
  %s0 = inlined_call_operand.hbm [shape: f32[4,4], index: 0, kind: input, shape index: {}]
  %s1 = inlined_call_operand.vmem [shape: f32[1,4], index: 1, kind: input, shape index: {}]
  %s2 = inlined_call_operand.hbm [shape: f32[2,4,2,128], index: 2, kind: input, shape index: {}]
  %s3 = inlined_call_operand.hbm [shape: f32[2,4,2,128], index: 3, kind: output, shape index: {}]
  %s4 = sld [smem:[#allocation0]]
  $region57: #{tpu_custom_call.1} parent=0
    _
  %s6 = ssub.s32 1, %s4
  %s7 = scalar_select 0, %s6, %s4
  $region1: #{tpu_custom_call.1} parent=0
    #allocation2 [shape = 'u8[2048]{0}', space=smem, size = 0x800, scoped, tag = 'input window, operand 0, single buffered']
    #allocation3 [shape = 's32[2]{0}', space=sflag, size = 0x8, scoped, tag = 'scoped memory for tpu_custom_call.1']
    #allocation4 [shape = 's32[2]{0}', space=sflag, size = 0x8, scoped, tag = 'scoped memory for tpu_custom_call.1']
    #allocation5 [shape = 's32[2]{0}', space=sflag, size = 0x8, scoped, tag = 'scoped memory for tpu_custom_call.1']
    #allocation6 [shape = 's32[2]{0}', space=sflag, size = 0x8, scoped, tag = 'scoped memory for tpu_custom_call.1']
    #allocation7 [shape = 'u8[512]{0}', space=smem, size = 0x200, scoped, tag = 'input window, operand 1, single buffered']
    #allocation8 [shape = 'u8[8192]{0}', space=vmem, size = 0x2000, scoped, tag = 'input window, operand 2']
    #allocation9 [shape = 'u8[8192]{0}', space=vmem, size = 0x2000, scoped, tag = 'output window, operand 0']
    %8 = vsyncpa [#allocation5], 0
    %9 = vsyncpa [#allocation6], 0
    %10 = vsyncpa [#allocation3], 0
    %s11 = scalar_lea.sflag [#allocation3], 1
    %12 = vsyncpa %s11, 0
    %13 = vsyncpa [#allocation4], 0
    %s14 = scalar_lea.sflag [#allocation4], 1
    %15 = vsyncpa %s14, 0
    loop: start=0, step=1, limit=4
    $region2: #{tpu_custom_call.1} parent=1 // loop_pre_header
      _
    $region3: #{tpu_custom_call.1} parent=1 // loop_header
      %s17 = sphi 0, %s21
      %p18 = scmp.ge.s32.totalorder %s17, 4
      %s24 = sphi 0, %s36
      %s25 = sphi 0, %s32
      %s26 = sphi 0, %s24
      %s27 = sphi 0, %s25
      %s28 = sphi 0, %s26
      %s29 = sphi 0, %s27
      %s37 = sphi 0, %s37
      %s39 = sphi 0, %s37
      %s40 = sphi 0, %s39
      %s54 = sphi 0, %s40
      %s58 = sphi 0, %s58
      %s60 = sphi 0, %s58
      %s61 = sphi 0, %s60
      %s75 = sphi 0, %s61
      %s83 = sphi 0, %s85
      %s86 = sphi 0, %s83
      %s87 = sphi 0, %s86
      %s103 = sphi 0, %s87
      %s111 = sphi 0, %s113
      %s114 = sphi 0, %s111
      %s115 = sphi 0, %s114
      %s131 = sphi 0, %s115
    $region4: #{tpu_custom_call.1} parent=1 // loop_header_branch
      %20 = sbr.rel (%p18) target = $region8
    $region5: #{tpu_custom_call.1} parent=1 // loop_body
      %s22 = ssub.s32 %s17, 1
      %s23 = ssub.s32 %s17, 2
      %s30 = sadd.s32 1, %s25
      %p31 = scmp.ge.s32.totalorder %s30, 1
      %s32 = scalar_select %p31, 0, %s30
      %s33 = sadd.s32 1, %s24
      %s34 = scalar_select %p31, %s33, %s24
      %p35 = scmp.ge.s32.totalorder %s34, 2
      %s36 = scalar_select %p35, 0, %s34
      %s38 = sadd.s32 %s37, 1
      %p41 = scmp.eq.s32.totalorder %s17, 1
      %p42 = scmp.ne.s32.totalorder %s37, %s39
      %p43 = scmp.eq.s32.totalorder %s17, 0
      %p44 = por %p42, %p43
      %p45 = scmp.ne.s32.totalorder %s37, %s39
      %p46 = scmp.eq.s32.totalorder %s22, 1
      %p47 = por %p45, %p46
      %p48 = scmp.ne.s32.totalorder %s39, %s40
      %p49 = scmp.eq.s32.totalorder %s22, 0
      %p50 = por %p48, %p49
      %p51 = scmp.ne.s32.totalorder %s39, %s40
      %p52 = scmp.eq.s32.totalorder %s23, 1
      %p53 = por %p51, %p52
      %p55 = scmp.ne.s32.totalorder %s40, %s54
      %p56 = scmp.eq.s32.totalorder %s23, 0
      %p57 = por %p55, %p56
      %s59 = sadd.s32 %s58, 1
      %p62 = scmp.eq.s32.totalorder %s17, 1
      %p63 = scmp.ne.s32.totalorder %s58, %s60
      %p64 = scmp.eq.s32.totalorder %s17, 0
      %p65 = por %p63, %p64
      %p66 = scmp.ne.s32.totalorder %s58, %s60
      %p67 = scmp.eq.s32.totalorder %s22, 1
      %p68 = por %p66, %p67
      %p69 = scmp.ne.s32.totalorder %s60, %s61
      %p70 = scmp.eq.s32.totalorder %s22, 0
      %p71 = por %p69, %p70
      %p72 = scmp.ne.s32.totalorder %s60, %s61
      %p73 = scmp.eq.s32.totalorder %s23, 1
      %p74 = por %p72, %p73
      %p76 = scmp.ne.s32.totalorder %s61, %s75
      %p77 = scmp.eq.s32.totalorder %s23, 0
      %p78 = por %p76, %p77
      %s79 = ssub.s32 %s24, %s36
      %s80 = ssub.s32 %s25, %s32
      %s81 = sor.u32 %s79, %s80
      %p82 = scmp.eq.s32.totalorder %s81, 0
      %s84 = sadd.s32 %s83, 1
      %s85 = scalar_select %p82, %s83, %s84
      %p88 = pneg %p82
      %p89 = scmp.eq.s32.totalorder %s17, 1
      %p90 = por %p88, %p89
      %p91 = scmp.ne.s32.totalorder %s83, %s86
      %p92 = scmp.eq.s32.totalorder %s17, 0
      %p93 = por %p91, %p92
      %p94 = scmp.ne.s32.totalorder %s83, %s86
      %p95 = scmp.eq.s32.totalorder %s22, 1
      %p96 = por %p94, %p95
      %p97 = scmp.ne.s32.totalorder %s86, %s87
      %p98 = scmp.eq.s32.totalorder %s22, 0
      %p99 = por %p97, %p98
      %p100 = scmp.ne.s32.totalorder %s86, %s87
      %p101 = scmp.eq.s32.totalorder %s23, 1
      %p102 = por %p100, %p101
      %p104 = scmp.ne.s32.totalorder %s87, %s103
      %p105 = scmp.eq.s32.totalorder %s23, 0
      %p106 = por %p104, %p105
      %s107 = ssub.s32 %s24, %s36
      %s108 = ssub.s32 %s25, %s32
      %s109 = sor.u32 %s107, %s108
      %p110 = scmp.eq.s32.totalorder %s109, 0
      %s112 = sadd.s32 %s111, 1
      %s113 = scalar_select %p110, %s111, %s112
      %p116 = pneg %p110
      %p117 = scmp.eq.s32.totalorder %s17, 1
      %p118 = por %p116, %p117
      %p119 = scmp.ne.s32.totalorder %s111, %s114
      %p120 = scmp.eq.s32.totalorder %s17, 0
      %p121 = por %p119, %p120
      %p122 = scmp.ne.s32.totalorder %s111, %s114
      %p123 = scmp.eq.s32.totalorder %s22, 1
      %p124 = por %p122, %p123
      %p125 = scmp.ne.s32.totalorder %s114, %s115
      %p126 = scmp.eq.s32.totalorder %s22, 0
      %p127 = por %p125, %p126
      %p128 = scmp.ne.s32.totalorder %s114, %s115
      %p129 = scmp.eq.s32.totalorder %s23, 1
      %p130 = por %p128, %p129
      %p132 = scmp.ne.s32.totalorder %s115, %s131
      %p133 = scmp.eq.s32.totalorder %s23, 0
      %p134 = por %p132, %p133
      %p135 = scmp.le.s32.totalorder 1, %s17
      %p136 = scmp.lt.s32.totalorder %s17, 3
      %p137 = pnand %p135, %p136
      %p138 = pneg %p137
      // Predicated region
      $region9: #{tpu_custom_call.1} parent=5 // pred_check
        _
      $region10: #{tpu_custom_call.1} parent=5 // pred_check_branch
        %140 = sbr.rel (%p137) target = $region12
      $region11: #{tpu_custom_call.1} parent=5 // pred_region
        %s141 = ssub.s32 %s17, 1
        // Predicated region
        $region13: #{tpu_custom_call.1} parent=11 // pred_check
          %p142 = pneg %p50
        $region14: #{tpu_custom_call.1} parent=11 // pred_check_branch
          %144 = sbr.rel (%p142) target = $region16
        $region15: #{tpu_custom_call.1} parent=11 // pred_region
          %s146 = ssub.s32 64, 64
          %147 = vsyncadd [#allocation5], %s146
          %150 = dma.hbm_to_smem %s0, 64, [#allocation2], [#allocation5]
        $region16: #{tpu_custom_call.1} parent=11 // pred_fallthru
          _
        // Predicated region
        $region17: #{tpu_custom_call.1} parent=11 // pred_check
          %p151 = pneg %p71
        $region18: #{tpu_custom_call.1} parent=11 // pred_check_branch
          %153 = sbr.rel (%p151) target = $region20
        $region19: #{tpu_custom_call.1} parent=11 // pred_region
          %s155 = ssub.s32 16, 16
          %156 = vsyncadd [#allocation6], %s155
          %s158 = sshll.u32 %s1, 4
          %s159 = int_to_ptr.vmem [resolvable:$true] %s158
          %161 = dma.vmem_to_smem %s159, 16, [#allocation7], [#allocation6]
        $region20: #{tpu_custom_call.1} parent=11 // pred_fallthru
          _
      $region12: #{tpu_custom_call.1} parent=5 // pred_fallthru
        _
      %p162 = scmp.lt.s32.totalorder %s17, 2
      // Predicated region
      $region21: #{tpu_custom_call.1} parent=5 // pred_check
        %p163 = pneg %p162
      $region22: #{tpu_custom_call.1} parent=5 // pred_check_branch
        %165 = sbr.rel (%p163) target = $region24
      $region23: #{tpu_custom_call.1} parent=5 // pred_region
        // Predicated region
        $region25: #{tpu_custom_call.1} parent=23 // pred_check
          %p166 = pneg %p93
        $region26: #{tpu_custom_call.1} parent=23 // pred_check_branch
          %168 = sbr.rel (%p166) target = $region28
        $region27: #{tpu_custom_call.1} parent=23 // pred_region
          %s169 = sand.u32 %s83, 1
          %s170 = scalar_lea.sflag [#allocation3], %s169
          %s171 = sand.u32 %s83, 1
          %s172 = smul.addr %s171, 8
          %s173 = scalar_lea.vmem [#allocation8], %s172
          %s175 = ssub.s32 128, 128
          %176 = vsyncadd %s170, %s175
          %s177 = smul.addr %s24, 4
          %s178 = sadd.s32 %s25, %s177
          %s179 = smul.addr %s178, 32
          %s180 = scalar_lea.hbm %s2, %s179
          %s181 = sshll.u32 %s173, 4
          %s182 = int_to_ptr.vmem [resolvable:$true] %s181
          %187 = dma.hbm_to_vmem [thread:$0]  %s180, 128, %s182, %s170, 32, 32, 2
        $region28: #{tpu_custom_call.1} parent=23 // pred_fallthru
          _
      $region24: #{tpu_custom_call.1} parent=5 // pred_fallthru
        _
      %p188 = scmp.le.s32.totalorder 1, %s17
      %p189 = scmp.lt.s32.totalorder %s17, 3
      %p190 = pnand %p188, %p189
      %p191 = pneg %p190
      // Predicated region
      $region29: #{tpu_custom_call.1} parent=5 // pred_check
        _
      $region30: #{tpu_custom_call.1} parent=5 // pred_check_branch
        %193 = sbr.rel (%p190) target = $region32
      $region31: #{tpu_custom_call.1} parent=5 // pred_region
        %s194 = ssub.s32 %s17, 1
        // Predicated region
        $region33: #{tpu_custom_call.1} parent=31 // pred_check
          %p195 = pneg %p50
        $region34: #{tpu_custom_call.1} parent=31 // pred_check_branch
          %197 = sbr.rel (%p195) target = $region36
        $region35: #{tpu_custom_call.1} parent=31 // pred_region
          %198 = dma.done [#allocation5], 64
        $region36: #{tpu_custom_call.1} parent=31 // pred_fallthru
          _
        // Predicated region
        $region37: #{tpu_custom_call.1} parent=31 // pred_check
          %p199 = pneg %p71
        $region38: #{tpu_custom_call.1} parent=31 // pred_check_branch
          %201 = sbr.rel (%p199) target = $region40
        $region39: #{tpu_custom_call.1} parent=31 // pred_region
          %202 = dma.done [#allocation6], 16
        $region40: #{tpu_custom_call.1} parent=31 // pred_fallthru
          _
        %s203 = sand.u32 %s86, 1
        %s204 = scalar_lea.sflag [#allocation3], %s203
        %s205 = sand.u32 %s86, 1
        %s206 = smul.addr %s205, 8
        %s207 = scalar_lea.vmem [#allocation8], %s206
        // Predicated region
        $region41: #{tpu_custom_call.1} parent=31 // pred_check
          %p208 = pneg %p99
        $region42: #{tpu_custom_call.1} parent=31 // pred_check_branch
          %210 = sbr.rel (%p208) target = $region44
        $region43: #{tpu_custom_call.1} parent=31 // pred_region
          %211 = dma.done %s204, 128
        $region44: #{tpu_custom_call.1} parent=31 // pred_fallthru
          _
        %212 = sfence
        %p213 = pneg %p50
        %p214 = pneg %p47
        %p215 = pneg %p71
        %p216 = pneg %p68
        %s217 = sand.u32 %s86, 1
        %s218 = scalar_lea.sflag [#allocation3], %s217
        %s219 = sand.u32 %s86, 1
        %s220 = smul.addr %s219, 8
        %s221 = scalar_lea.vmem [#allocation8], %s220
        %p222 = pneg %p99
        %p223 = pneg %p96
        %p224 = pneg %p127
        %p225 = pneg %p124
        %s226 = sand.u32 %s114, 1
        %s227 = scalar_lea.sflag [#allocation4], %s226
        %s228 = sand.u32 %s114, 1
        %s229 = smul.addr %s228, 8
        %s230 = scalar_lea.vmem [#allocation9], %s229
        %v231 = vld [vmem:[%s207] sm:$0x3]
        %v232 = vld [vmem:[%s207 + $0x2] sm:$0x3]
        %v233 = vld [vmem:[%s207 + $0x4] sm:$0x3]
        %v234 = vld [vmem:[%s207 + $0x6] sm:$0x3]
        %s235 = sld [smem:[#allocation7]]
        %v236 = vstv %s235
        %v237 = vadd.f32 %v231, %v236
        %s238 = sld [smem:[#allocation2]]
        %v239 = vstv %s238
        %v240 = vmul.f32 %v239, %v231
        %v241 = vadd.f32 %v237, %v240
        %s242 = sld [smem:[#allocation2 + $0x80]]
        %v243 = vstv %s242
        %v244 = vmul.f32 %v243, %v232
        %v245 = vadd.f32 %v241, %v244
        %s246 = sld [smem:[#allocation2 + $0x100]]
        %v247 = vstv %s246
        %v248 = vmul.f32 %v247, %v233
        %v249 = vadd.f32 %v245, %v248
        %s250 = sld [smem:[#allocation2 + $0x180]]
        %v251 = vstv %s250
        %v252 = vmul.f32 %v251, %v234
        %v253 = vadd.f32 %v249, %v252
        %254 = vst [vmem:[%s230] sm:$0x3] %v253
        %s255 = sld [smem:[#allocation7 + $0x1]]
        %v256 = vstv %s255
        %v257 = vadd.f32 %v232, %v256
        %s258 = sld [smem:[#allocation2 + $0x1]]
        %v259 = vstv %s258
        %v260 = vmul.f32 %v259, %v231
        %v261 = vadd.f32 %v257, %v260
        %s262 = sld [smem:[#allocation2 + $0x81]]
        %v263 = vstv %s262
        %v264 = vmul.f32 %v263, %v232
        %v265 = vadd.f32 %v261, %v264
        %s266 = sld [smem:[#allocation2 + $0x101]]
        %v267 = vstv %s266
        %v268 = vmul.f32 %v267, %v233
        %v269 = vadd.f32 %v265, %v268
        %s270 = sld [smem:[#allocation2 + $0x181]]
        %v271 = vstv %s270
        %v272 = vmul.f32 %v271, %v234
        %v273 = vadd.f32 %v269, %v272
        %s274 = scalar_lea.vmem %s230, 2 [#allocation9]
        %275 = vst [vmem:[%s274] sm:$0x3] %v273
        %s276 = sld [smem:[#allocation7 + $0x2]]
        %v277 = vstv %s276
        %v278 = vadd.f32 %v233, %v277
        %s279 = sld [smem:[#allocation2 + $0x2]]
        %v280 = vstv %s279
        %v281 = vmul.f32 %v280, %v231
        %v282 = vadd.f32 %v278, %v281
        %s283 = sld [smem:[#allocation2 + $0x82]]
        %v284 = vstv %s283
        %v285 = vmul.f32 %v284, %v232
        %v286 = vadd.f32 %v282, %v285
        %s287 = sld [smem:[#allocation2 + $0x102]]
        %v288 = vstv %s287
        %v289 = vmul.f32 %v288, %v233
        %v290 = vadd.f32 %v286, %v289
        %s291 = sld [smem:[#allocation2 + $0x182]]
        %v292 = vstv %s291
        %v293 = vmul.f32 %v292, %v234
        %v294 = vadd.f32 %v290, %v293
        %s295 = scalar_lea.vmem %s230, 4 [#allocation9]
        %296 = vst [vmem:[%s295] sm:$0x3] %v294
        %s297 = sld [smem:[#allocation7 + $0x3]]
        %v298 = vstv %s297
        %v299 = vadd.f32 %v234, %v298
        %s300 = sld [smem:[#allocation2 + $0x3]]
        %v301 = vstv %s300
        %v302 = vmul.f32 %v301, %v231
        %v303 = vadd.f32 %v299, %v302
        %s304 = sld [smem:[#allocation2 + $0x83]]
        %v305 = vstv %s304
        %v306 = vmul.f32 %v305, %v232
        %v307 = vadd.f32 %v303, %v306
        %s308 = sld [smem:[#allocation2 + $0x103]]
        %v309 = vstv %s308
        %v310 = vmul.f32 %v309, %v233
        %v311 = vadd.f32 %v307, %v310
        %s312 = sld [smem:[#allocation2 + $0x183]]
        %v313 = vstv %s312
        %v314 = vmul.f32 %v313, %v234
        %v315 = vadd.f32 %v311, %v314
        %s316 = scalar_lea.vmem %s230, 6 [#allocation9]
        %317 = vst [vmem:[%s316] sm:$0x3] %v315
        %s318 = sand.u32 %s114, 1
        %s319 = scalar_lea.sflag [#allocation4], %s318
        %s320 = sand.u32 %s114, 1
        %s321 = smul.addr %s320, 8
        %s322 = scalar_lea.vmem [#allocation9], %s321
        // Predicated region
        $region45: #{tpu_custom_call.1} parent=31 // pred_check
          %p323 = pneg %p124
        $region46: #{tpu_custom_call.1} parent=31 // pred_check_branch
          %325 = sbr.rel (%p323) target = $region48
        $region47: #{tpu_custom_call.1} parent=31 // pred_region
          %s327 = ssub.s32 128, 128
          %328 = vsyncadd %s319, %s327
          %s329 = smul.addr %s26, 4
          %s330 = sadd.s32 %s27, %s329
          %s331 = smul.addr %s330, 32
          %s332 = scalar_lea.hbm %s3, %s331
          %s333 = sshll.u32 %s322, 4
          %s334 = int_to_ptr.vmem [resolvable:$true] %s333
          %339 = dma.vmem_to_hbm [thread:$0]  %s334, 128, %s332, %s319, 32, 32, 2
        $region48: #{tpu_custom_call.1} parent=31 // pred_fallthru
          _
      $region32: #{tpu_custom_call.1} parent=5 // pred_fallthru
        _
      %p340 = scmp.le.s32.totalorder 2, %s17
      // Predicated region
      $region49: #{tpu_custom_call.1} parent=5 // pred_check
        %p341 = pneg %p340
      $region50: #{tpu_custom_call.1} parent=5 // pred_check_branch
        %343 = sbr.rel (%p341) target = $region52
      $region51: #{tpu_custom_call.1} parent=5 // pred_region
        %s344 = ssub.s32 %s17, 2
        // Predicated region
        $region53: #{tpu_custom_call.1} parent=51 // pred_check
          %p345 = pneg %p130
        $region54: #{tpu_custom_call.1} parent=51 // pred_check_branch
          %347 = sbr.rel (%p345) target = $region56
        $region55: #{tpu_custom_call.1} parent=51 // pred_region
          %s348 = sand.u32 %s115, 1
          %s349 = scalar_lea.sflag [#allocation4], %s348
          %s350 = sand.u32 %s115, 1
          %s351 = smul.addr %s350, 8
          %s352 = scalar_lea.vmem [#allocation9], %s351
          %353 = dma.done %s349, 128
        $region56: #{tpu_custom_call.1} parent=51 // pred_fallthru
          _
      $region52: #{tpu_custom_call.1} parent=5 // pred_fallthru
        _
    $region6: #{tpu_custom_call.1} parent=1 // loop_footer
      %s21 = sadd.s32 1, %s17
    $region7: #{tpu_custom_call.1} parent=1 // loop_footer_branch
      %16 = sbr.rel target = $region3
    $region8: #{tpu_custom_call.1} parent=1 // loop_exit
      _
    %354 = vsyncpa [#allocation3], 1
    %s355 = scalar_lea.sflag [#allocation3], 1
    %356 = vsyncpa %s355, 1
    %357 = vsyncpa [#allocation4], 1
    %s358 = scalar_lea.sflag [#allocation4], 1
    %359 = vsyncpa %s358, 1
    %360 = vsyncpa [#allocation5], 1
    %s361 = scalar_lea.sflag [#allocation5], 1
    %362 = vsyncpa %s361, 1
    %363 = vsyncpa [#allocation6], 1
    %s364 = scalar_lea.sflag [#allocation6], 1
    %365 = vsyncpa %s364, 1

</llo_original>
